<compile_context>
chip_gen: v5e
topology: v5e:2x2
jax: 0.10.0
libtpu: 0.0.40
codegen_flags: <defaults>
</compile_context>

<pallas_src>
import jax
import jax.numpy as jnp
from jax import lax
from jax.experimental import pallas as pl
from jax.experimental.pallas import tpu as pltpu


def _head_kernel(x_ref, w_ref, b_ref, out_ref):
    # MXU matmul with f32 accumulation; bias-add + fused sigmoid/relu on VPU+EUP.
    y = jnp.dot(x_ref[...], w_ref[...], preferred_element_type=jnp.float32)
    y = y + b_ref[...]                                   # (tm, nout) + (1, nout)
    col = lax.broadcasted_iota(jnp.int32, y.shape, dimension=1)
    act = jnp.where(col < 3, jax.nn.sigmoid(y), jnp.maximum(y, 0.0))
    out_ref[...] = act.astype(out_ref.dtype)


def _round_up(v, m):
    return (v + m - 1) // m * m


def no_view_dir_head(x, view_dirs, w, b, *, tm_max=2048):
    """Pallas implementation of NoViewDirHead.forward.

    x        : (..., ninput) float32
    view_dirs: unused (kept for signature parity with the PyTorch module)
    w        : (ninput, noutput) float32   (noutput >= 4; transpose of Linear.weight)
    b        : (noutput,) float32
    returns  : (sigma, rgb) with shapes (...,) and (..., 3)
    """
    del view_dirs  # unused, exactly like the PyTorch module
    ninput, noutput = w.shape
    lead_shape = x.shape[:-1]
    M = 1
    for d in lead_shape:
        M *= d

    x_flat = x.reshape(M, ninput).astype(jnp.float32)
    b2 = b.reshape(1, noutput).astype(jnp.float32)

    # Row-tile size: multiple of 8 (sublane), capped for VMEM; pad M up so the
    # grid divides evenly (padded rows are sliced off after the call).
    tm = min(tm_max, _round_up(max(M, 1), 8))
    m_pad = _round_up(max(M, 1), tm)
    if m_pad != M:
        x_flat = jnp.pad(x_flat, ((0, m_pad - M), (0, 0)))

    grid = (m_pad // tm,)

    cost = pl.CostEstimate(
        flops=2 * m_pad * ninput * noutput,
        transcendentals=3 * m_pad,  # sigmoid exp on 3 columns per row
        bytes_accessed=4 * (m_pad * ninput + m_pad * noutput
                            + ninput * noutput + noutput),
    )

    out = pl.pallas_call(
        _head_kernel,
        out_shape=jax.ShapeDtypeStruct((m_pad, noutput), jnp.float32),
        grid_spec=pltpu.PrefetchScalarGridSpec(
            num_scalar_prefetch=0,
            grid=grid,
            in_specs=[
                pl.BlockSpec((tm, ninput), lambda i: (i, 0)),       # tiled over M
                pl.BlockSpec((ninput, noutput), lambda i: (0, 0)),  # resident
                pl.BlockSpec((1, noutput), lambda i: (0, 0)),       # resident
            ],
            out_specs=pl.BlockSpec((tm, noutput), lambda i: (i, 0)),
        ),
        compiler_params=pltpu.CompilerParams(
            dimension_semantics=("parallel",),       # shards tiles across v7x's 2 TCs
            vmem_limit_bytes=64 * 1024 * 1024,
        ),
        cost_estimate=cost,
    )(x_flat, w.astype(jnp.float32), b2)

    out = out[:M]
    rgb = out[:, :3].reshape(lead_shape + (3,))
    sigma = out[:, 3].reshape(lead_shape)
    return sigma, rgb


if __name__ == "__main__":
    # small shapes consistent with the module: batch=2, seq=8, ninput=32, noutput=4
    ninput, noutput = 32, 4
    key = jax.random.PRNGKey(0)
    kx, kv, kw, kb = jax.random.split(key, 4)

    x = jax.random.normal(kx, (2, 8, ninput), dtype=jnp.float32)
    view_dirs = jax.random.normal(kv, (2, 8, 3), dtype=jnp.float32)  # unused

    # deterministic parameter init (mimics nn.Linear uniform(-1/sqrt(fan_in), ...))
    bound = 1.0 / jnp.sqrt(jnp.float32(ninput))
    w = jax.random.uniform(kw, (ninput, noutput), jnp.float32, -bound, bound)
    b = jax.random.uniform(kb, (noutput,), jnp.float32, -bound, bound)

    sigma, rgb = no_view_dir_head(x, view_dirs, w, b)
    sigma, rgb = jax.block_until_ready((sigma, rgb))

    # pure-JAX reference check
    y_ref = x @ w + b
    rgb_ref = jax.nn.sigmoid(y_ref[..., :3])
    sigma_ref = jnp.maximum(y_ref[..., 3], 0.0)
    assert sigma.shape == sigma_ref.shape and rgb.shape == rgb_ref.shape
    assert jnp.allclose(sigma, sigma_ref, atol=1e-5, rtol=1e-5)
    assert jnp.allclose(rgb, rgb_ref, atol=1e-5, rtol=1e-5)

    print("KERNEL_OK")
</pallas_src>

<mosaic_0001>
module attributes {stable_mosaic.version = 11 : i64} {
  func.func @_head_kernel(%arg0: i32, %arg1: memref<16x32xf32, #tpu.memory_space<vmem>>, %arg2: memref<32x4xf32, #tpu.memory_space<vmem>>, %arg3: memref<1x4xf32, #tpu.memory_space<vmem>>, %arg4: memref<16x4xf32, #tpu.memory_space<vmem>>) attributes {dimension_semantics = [#tpu.dimension_semantics<parallel>], iteration_bounds = array<i64: 1>, scalar_prefetch = 0 : i64, scratch_operands = 0 : i64, tpu.core_type = #tpu.core_type<tc>, window_params = [{transform_indices = @transform_0, window_bounds = array<i64: 16, 32>}, {pipeline_mode = #tpu.pipeline_mode<synchronous>, transform_indices = @transform_1, window_bounds = array<i64: 32, 4>}, {pipeline_mode = #tpu.pipeline_mode<synchronous>, transform_indices = @transform_2, window_bounds = array<i64: 1, 4>}, {transform_indices = @transform_3, window_bounds = array<i64: 16, 4>}]} {
    %c0 = arith.constant 0 : index
    %c0_0 = arith.constant 0 : index
    %0 = vector.load %arg1[%c0, %c0_0] : memref<16x32xf32, #tpu.memory_space<vmem>>, vector<16x32xf32>
    %c0_1 = arith.constant 0 : index
    %c0_2 = arith.constant 0 : index
    %1 = vector.load %arg2[%c0_1, %c0_2] : memref<32x4xf32, #tpu.memory_space<vmem>>, vector<32x4xf32>
    %cst = arith.constant dense<0.000000e+00> : vector<16x4xf32>
    %2 = tpu.matmul %0, %1, %cst {dimension_numbers = #tpu.dot_dimension_numbers<[1], [0], [0], [1], [0, 0, 1, 1], [], []>} : vector<16x32xf32>, vector<32x4xf32>, vector<16x4xf32> -> vector<16x4xf32>
    %c0_3 = arith.constant 0 : index
    %c0_4 = arith.constant 0 : index
    %3 = vector.load %arg3[%c0_3, %c0_4] : memref<1x4xf32, #tpu.memory_space<vmem>>, vector<1x4xf32>
    %4 = vector.broadcast %3 : vector<1x4xf32> to vector<16x4xf32>
    %5 = arith.addf %2, %4 : vector<16x4xf32>
    %6 = tpu.iota {dimensions = array<i32: 1>} : vector<16x4xi32>
    %c3_i32 = arith.constant 3 : i32
    %7 = vector.broadcast %c3_i32 : i32 to vector<16x4xi32>
    %8 = arith.cmpi slt, %6, %7 : vector<16x4xi32>
    %9 = arith.negf %5 : vector<16x4xf32>
    %10 = math.exp %9 : vector<16x4xf32>
    %cst_5 = arith.constant 1.000000e+00 : f32
    %11 = vector.broadcast %cst_5 : f32 to vector<16x4xf32>
    %12 = arith.addf %11, %10 : vector<16x4xf32>
    %13 = arith.divf %11, %12 : vector<16x4xf32>
    %cst_6 = arith.constant 0.000000e+00 : f32
    %14 = vector.broadcast %cst_6 : f32 to vector<16x4xf32>
    %15 = arith.maximumf %5, %14 : vector<16x4xf32>
    %16 = arith.select %8, %13, %15 : vector<16x4xi1>, vector<16x4xf32>
    %c0_7 = arith.constant 0 : index
    %c0_8 = arith.constant 0 : index
    %17 = vector.load %arg4[%c0_7, %c0_8] : memref<16x4xf32, #tpu.memory_space<vmem>>, vector<16x4xf32>
    tpu.vector_store %arg4[%c0_7, %c0_8], %16 {strides = array<i32>} : memref<16x4xf32, #tpu.memory_space<vmem>>, vector<16x4xf32>,
    return
  }
  func.func @transform_0(%arg0: i32) -> (i32, i32) {
    %c0_i32 = arith.constant 0 : i32
    %c0_i32_0 = arith.constant 0 : i32
    return %arg0, %c0_i32 : i32, i32
  }
  func.func @transform_1(%arg0: i32) -> (i32, i32) {
    %c0_i32 = arith.constant 0 : i32
    %c0_i32_0 = arith.constant 0 : i32
    %c0_i32_1 = arith.constant 0 : i32
    return %c0_i32, %c0_i32_0 : i32, i32
  }
  func.func @transform_2(%arg0: i32) -> (i32, i32) {
    %c0_i32 = arith.constant 0 : i32
    %c0_i32_0 = arith.constant 0 : i32
    %c0_i32_1 = arith.constant 0 : i32
    return %c0_i32, %c0_i32_0 : i32, i32
  }
  func.func @transform_3(%arg0: i32) -> (i32, i32) {
    %c0_i32 = arith.constant 0 : i32
    %c0_i32_0 = arith.constant 0 : i32
    return %arg0, %c0_i32 : i32, i32
  }
}

</mosaic_0001>

<llo_original>
// kernel: tpu_custom_call.1
$region0: #{tpu_custom_call.1}
  #allocation0 [shape = 'u32[]', space=smem, size = 0x4, offset = 0x4, fixed_abs, tag = 'smem constant byte address 0x4 - core index']
  #allocation1 [shape = 'u32[72,128]{1,0:T(1,128)}', space=vmem, size = 0x9000, scoped, tag = 'internal scratch']
  %s0 = inlined_call_operand.vmem [shape: f32[16,32], index: 0, kind: input, shape index: {}]
  %s1 = inlined_call_operand.vmem [shape: f32[32,4], index: 1, kind: input, shape index: {}]
  %s2 = inlined_call_operand.vmem [shape: f32[1,4], index: 2, kind: input, shape index: {}]
  %s3 = inlined_call_operand.vmem [shape: f32[16,4], index: 3, kind: output, shape index: {}]
  %s4 = sld [smem:[#allocation0]]
  $region22: #{tpu_custom_call.1} parent=0
    _
  %s6 = ssub.s32 1, %s4
  %s7 = scalar_select 0, %s6, %s4
  // Predicated region
  $region2: #{tpu_custom_call.1} parent=0 // pred_check
    _
  $region3: #{tpu_custom_call.1} parent=0 // pred_check_branch
    %9 = sbr.rel (0) target = $region5
  $region4: #{tpu_custom_call.1} parent=0 // pred_region
    _
  $region5: #{tpu_custom_call.1} parent=0 // pred_fallthru
    _
  // Predicated region
  $region6: #{tpu_custom_call.1} parent=0 // pred_check
    _
  $region7: #{tpu_custom_call.1} parent=0 // pred_check_branch
    %11 = sbr.rel (0) target = $region9
  $region8: #{tpu_custom_call.1} parent=0 // pred_region
    _
  $region9: #{tpu_custom_call.1} parent=0 // pred_fallthru
    _
  // Predicated region
  $region10: #{tpu_custom_call.1} parent=0 // pred_check
    _
  $region11: #{tpu_custom_call.1} parent=0 // pred_check_branch
    %13 = sbr.rel (0) target = $region13
  $region12: #{tpu_custom_call.1} parent=0 // pred_region
    _
  $region13: #{tpu_custom_call.1} parent=0 // pred_fallthru
    _
  %v14 = vld [vmem:[%s0] sm:$0xff]
  %v15 = vld [vmem:[%s0 + $0x8] sm:$0xff]
  %v16 = vld [vmem:[%s1] sm:$0xff]
  %v17 = vld [vmem:[%s1 + $0x8] sm:$0xff]
  %v18 = vld [vmem:[%s1 + $0x10] sm:$0xff]
  %v19 = vld [vmem:[%s1 + $0x18] sm:$0xff]
  %v20 = vld [vmem:[%s2] sm:$0x1]
  %v22 = vperm.slane %v20, 0
  %vm24 = vcmask 261120
  %v26 = vsel %vm24, %v14, 0
  %v29 = vsel %vm24, %v15, 0
  %31 = vmatpush.msra.mxu0 0.0
  %32 = vmatpush.msra.mxu0 0.0
  %33 = vmatpush.msra.mxu0 0.0
  %34 = vmatpush.msra.mxu0 0.0
  %35 = vmatpush.msra.mxu0 0.0
  %36 = vmatpush.msra.mxu0 0.0
  %37 = vmatpush.msra.mxu0 0.0
  %38 = vmatpush.msra.mxu0 0.0
  %39 = vmatpush.msra.mxu0 0.0
  %40 = vmatpush.msra.mxu0 0.0
  %41 = vmatpush.msra.mxu0 0.0
  %42 = vmatpush.msra.mxu0 0.0
  %43 = vmatpush.msra.mxu0 %v19
  %44 = vmatpush.msra.mxu0 %v18
  %45 = vmatpush.msra.mxu0 %v17
  %46 = vmatpush.msra.mxu0 %v16
  %47 = vmatmul.f32.gmra.mxu0 %v26
  %v48 = vpop.f32.mrf.mxu0
  %v49 = vadd.f32 %v22, %v48
  %50 = vmatmul.f32.gmra.mxu0 %v29
  %v51 = vpop.f32.mrf.mxu0
  %v52 = vadd.f32 %v22, %v51
  %53 = vdwg.mxu0
  %v54 = vlaneseq
  %v55 = vand.u32 %v54, 127
  %vm56 = vcmp.lt.s32.totalorder %v55, 3
  %v57 = vxor.u32 %v49, 2147483648
  %v58 = vxor.u32 %v52, 2147483648
  %v59 = vmul.f32 %v57, 1.442695
  %v60 = vpow.pop %v59
  %v61 = vmul.f32 %v58, 1.442695
  %v62 = vpow.pop %v61
  %v63 = vadd.f32 %v60, 1.0
  %v64 = vadd.f32 %v62, 1.0
  %v65 = vrcp.pop %v63
  %v66 = vmul.f32 %v63, %v65
  %v67 = vsub.f32 1.0, %v66
  %v68 = vmul.f32 %v65, %v67
  %v69 = vadd.f32 %v65, %v68
  %vm70 = vweird.f32 %v63
  %vm71 = vweird.f32 %v65
  %vm72 = vmor %vm70, %vm71
  %v73 = vsel %vm72, %v65, %v69
  %v74 = vand.u32 2147483647, %v63
  %vm75 = vcmp.eq.f32.partialorder %v74, 8.507059e+37
  %v76 = vand.u32 %v63, 2147483648
  %v77 = vor.u32 1.1754944e-38, %v76
  %v78 = vsel %vm75, %v77, %v73
  %v79 = vmul.f32 1.0, %v78
  %v80 = vrcp.pop %v64
  %v81 = vmul.f32 %v64, %v80
  %v82 = vsub.f32 1.0, %v81
  %v83 = vmul.f32 %v80, %v82
  %v84 = vadd.f32 %v80, %v83
  %vm85 = vweird.f32 %v64
  %vm86 = vweird.f32 %v80
  %vm87 = vmor %vm85, %vm86
  %v88 = vsel %vm87, %v80, %v84
  %v89 = vand.u32 2147483647, %v64
  %vm90 = vcmp.eq.f32.partialorder %v89, 8.507059e+37
  %v91 = vand.u32 %v64, 2147483648
  %v92 = vor.u32 1.1754944e-38, %v91
  %v93 = vsel %vm90, %v92, %v88
  %v94 = vmul.f32 1.0, %v93
  %v95 = vmax.f32 %v49, 0.0
  %v96 = vmax.f32 %v52, 0.0
  %v97 = vsel %vm56, %v79, %v95
  %v98 = vsel %vm56, %v94, %v96
  %vm99 = vcmask 31744
  %100 = vst.msk [vmem:[%s3] sm:$0xff] %vm99, %v97
  %101 = vst.msk [vmem:[%s3 + $0x8] sm:$0xff] %vm99, %v98
  // Predicated region
  $region14: #{tpu_custom_call.1} parent=0 // pred_check
    _
  $region15: #{tpu_custom_call.1} parent=0 // pred_check_branch
    %103 = sbr.rel (0) target = $region17
  $region16: #{tpu_custom_call.1} parent=0 // pred_region
    _
  $region17: #{tpu_custom_call.1} parent=0 // pred_fallthru
    _
  // Predicated region
  $region18: #{tpu_custom_call.1} parent=0 // pred_check
    _
  $region19: #{tpu_custom_call.1} parent=0 // pred_check_branch
    %105 = sbr.rel (0) target = $region21
  $region20: #{tpu_custom_call.1} parent=0 // pred_region
    _
  $region21: #{tpu_custom_call.1} parent=0 // pred_fallthru
    _

</llo_original>
